<compile_context>
chip_gen: v7x
topology: tpu7x:2x2x1
jax: 0.10.0
libtpu: 0.0.40
codegen_flags: <defaults>
</compile_context>

<pallas_src>
import functools

import jax
import jax.numpy as jnp
from jax import lax
from jax.experimental import pallas as pl
from jax.experimental.pallas import tpu as pltpu


def _supcon_kernel(k_ref, trow_ref, tcol_ref, out_ref, *, inv_temp, batch,
                   chunk):
    # k_ref:    (Bp, D)              f32  all (padded) projections, resident
    # trow_ref: (TQ, 1)              i32  targets of this row tile
    # tcol_ref: (n_chunks, 1, chunk) i32  all (padded) targets, chunked rows
    # out_ref:  (TQ, 1)              f32  per-sample loss for this row tile
    tq = trow_ref.shape[0]
    bp = k_ref.shape[0]
    n_chunks = bp // chunk                       # static Python int

    row_base = pl.multiple_of(pl.program_id(0) * tq, 128)
    # Fold temperature into the small operand; slice the query tile from the
    # resident K buffer (no second DMA of the projections).
    q = k_ref[pl.ds(row_base, tq), :] * jnp.float32(inv_temp)        # (tq, d)
    row_ids = row_base + lax.broadcasted_iota(jnp.int32, (tq, 1), 0)  # (tq, 1)
    t_row = trow_ref[...]                                             # (tq, 1)
    neg_big = jnp.float32(-1e30)
    zero = jnp.float32(0.0)

    def chunk_logits(c):
        col0 = pl.multiple_of(c * chunk, 128)
        kc = k_ref[pl.ds(col0, chunk), :]                             # (chunk, d)
        l = lax.dot_general(q, kc,
                            dimension_numbers=(((1,), (1,)), ((), ())),
                            preferred_element_type=jnp.float32)       # (tq, chunk)
        col_ids = col0 + lax.broadcasted_iota(jnp.int32, (tq, chunk), 1)
        return l, col_ids

    # ---- pass 1: exact row max over valid (unpadded) columns -------------
    def max_body(c, m):
        l, col_ids = chunk_logits(c)
        lm = jnp.where(col_ids < batch, l, neg_big)
        return jnp.maximum(m, jnp.max(lm, axis=1, keepdims=True))

    row_max = lax.fori_loop(0, n_chunks, max_body,
                            jnp.full((tq, 1), neg_big, jnp.float32))

    # ---- pass 2: masked sums, preserving the PyTorch +1e-5 semantics -----
    def sum_body(c, carry):
        denom, card, pos_log = carry
        l, col_ids = chunk_logits(c)
        valid = col_ids < batch                      # padded columns excluded
        offdiag = (col_ids != row_ids) & valid       # mask_anchor_out
        pos = (t_row == tcol_ref[c]) & offdiag       # mask_combined
        # exp_dot_tempered = exp(l - rowmax) + 1e-5 (exact reference formula)
        e = jnp.exp(jnp.where(valid, l, neg_big) - row_max) + jnp.float32(1e-5)
        denom = denom + jnp.sum(jnp.where(offdiag, e, zero),
                                axis=1, keepdims=True)
        card = card + jnp.sum(jnp.where(pos, jnp.float32(1.0), zero),
                              axis=1, keepdims=True)
        pos_log = pos_log + jnp.sum(jnp.where(pos, jnp.log(e), zero),
                                    axis=1, keepdims=True)
        return denom, card, pos_log

    init = (jnp.zeros((tq, 1), jnp.float32),
            jnp.zeros((tq, 1), jnp.float32),
            jnp.zeros((tq, 1), jnp.float32))
    denom, card, pos_log = lax.fori_loop(0, n_chunks, sum_body, init)

    # sum(pos * -log(e / denom)) / card == log(denom) - sum(pos * log(e)) / card
    # (card == 0 -> NaN, same as the PyTorch reference; padded rows discarded
    #  by the wrapper).
    out_ref[...] = jnp.log(denom) - pos_log / card


def _pick_col_chunk(bp, want):
    """Largest multiple of 128 that divides bp and is <= max(want, 128)."""
    want = max(128, int(want))
    best, c, limit = 128, 128, min(bp, want)
    while c <= limit:
        if bp % c == 0:
            best = c
        c += 128
    return best


@functools.partial(jax.jit, static_argnames=("temperature", "block_q",
                                             "col_chunk"))
def supervised_contrastive_loss(projections, targets, temperature=0.07,
                                block_q=128, col_chunk=1024):
    """projections: [B, D] float, targets: [B] int -> scalar f32 loss.

    block_q: row-tile size (128 portable; 256 is a good choice on v6e).
    col_chunk: target column-chunk width (512-1024 recommended).
    """
    b, d = projections.shape
    bp0 = pl.cdiv(b, 128) * 128
    block_q = max(128, (min(int(block_q), bp0) // 128) * 128)
    # Keep >=2 grid steps when possible so the "parallel" row axis can use
    # both TensorCores on v7x (no effect on v5e/v6e).
    if bp0 // block_q < 2 and bp0 >= 256:
        block_q = max(128, ((bp0 // 2) // 128) * 128)
    bp = pl.cdiv(b, block_q) * block_q
    chunk = _pick_col_chunk(bp, col_chunk)
    n_chunks = bp // chunk

    # Pad + cast fuse into one pass because this wrapper is jitted.
    p = projections.astype(jnp.float32)
    t = targets.astype(jnp.int32)
    if bp != b:
        p = jnp.pad(p, ((0, bp - b), (0, 0)))
        t = jnp.pad(t, (0, bp - b), constant_values=-1)
    t_row = t.reshape(bp, 1)
    t_col = t.reshape(n_chunks, 1, chunk)

    # Footprint-derived, generation-aware VMEM limit (never the full physical
    # VMEM of the chip).
    try:
        vmem_cap = int(pltpu.get_tpu_info().vmem_capacity_bytes)
    except Exception:  # pragma: no cover - conservative fallback
        vmem_cap = 128 * 1024 * 1024
    est = (bp * d * 4                      # resident K (single-buffered)
           + 6 * block_q * chunk * 4       # live per-chunk temporaries
           + block_q * d * 4               # query tile
           + 64 * bp                       # targets (sublane-padded, 2 bufs)
           + (2 << 20))                    # headroom
    vmem_limit = int(min(max(est, 32 << 20), int(0.75 * vmem_cap)))

    kernel = functools.partial(_supcon_kernel,
                               inv_temp=1.0 / float(temperature),
                               batch=b, chunk=chunk)
    per_sample = pl.pallas_call(
        kernel,
        out_shape=jax.ShapeDtypeStruct((bp, 1), jnp.float32),
        grid=(bp // block_q,),
        in_specs=[
            # Resident projections: constant index map -> single buffer.
            pl.BlockSpec((bp, d), lambda i: (0, 0),
                         pipeline_mode=pl.Buffered(1)),
            pl.BlockSpec((block_q, 1), lambda i: (i, 0)),     # row-tile targets
            pl.BlockSpec((n_chunks, 1, chunk), lambda i: (0, 0, 0)),  # all tgts
        ],
        out_specs=pl.BlockSpec((block_q, 1), lambda i: (i, 0)),
        compiler_params=pltpu.CompilerParams(
            dimension_semantics=("parallel",),
            vmem_limit_bytes=vmem_limit),
    )(p, t_row, t_col)

    # Tiny final reduction (B scalars) outside the kernel; padded rows dropped.
    return jnp.mean(per_sample[:b, 0])


def _reference(projections, targets, temperature=0.07):
    # Pure-JAX reference mirroring the PyTorch module.
    p = projections.astype(jnp.float32)
    logits = jnp.matmul(p, p.T, precision=lax.Precision.HIGHEST) / temperature
    exp_dot = jnp.exp(logits - jnp.max(logits, axis=1, keepdims=True)) + 1e-5
    mask_sim = (targets[:, None] == targets[None, :]).astype(jnp.float32)
    mask_out = 1.0 - jnp.eye(p.shape[0], dtype=jnp.float32)
    mask_comb = mask_sim * mask_out
    card = jnp.sum(mask_comb, axis=1)
    log_prob = -jnp.log(exp_dot / jnp.sum(exp_dot * mask_out, axis=1,
                                          keepdims=True))
    per_sample = jnp.sum(log_prob * mask_comb, axis=1) / card
    return jnp.mean(per_sample)


if __name__ == "__main__":
    key = jax.random.PRNGKey(0)

    # Test 1: small batch, single row tile, single column chunk.
    B, D = 8, 32
    proj = jax.random.normal(key, (B, D), dtype=jnp.float32)
    proj = proj / jnp.linalg.norm(proj, axis=1, keepdims=True)
    tgts = (jnp.arange(B, dtype=jnp.int32) % 2)   # every class has >=2 members
    loss = supervised_contrastive_loss(proj, tgts, temperature=0.07)
    jax.block_until_ready(loss)
    ref = _reference(proj, tgts, temperature=0.07)
    assert jnp.allclose(loss, ref, rtol=1e-3, atol=1e-3), (loss, ref)

    # Test 2: B not a multiple of 128 + col_chunk=128 -> exercises padding,
    # two row tiles and the multi-chunk two-pass loops.
    kp2 = jax.random.PRNGKey(1)
    B2, D2 = 200, 32
    p2 = jax.random.normal(kp2, (B2, D2), dtype=jnp.float32)
    p2 = p2 / jnp.linalg.norm(p2, axis=1, keepdims=True)
    t2 = (jnp.arange(B2, dtype=jnp.int32) % 4)    # every class has >=2 members
    loss2 = supervised_contrastive_loss(p2, t2, temperature=0.07,
                                        col_chunk=128)
    jax.block_until_ready(loss2)
    ref2 = _reference(p2, t2, temperature=0.07)
    assert jnp.allclose(loss2, ref2, rtol=1e-2, atol=1e-2), (loss2, ref2)

    print("KERNEL_OK")
</pallas_src>

<mosaic_0001>
module attributes {stable_mosaic.version = 11 : i64} {
  func.func @_supcon_kernel(%arg0: i32, %arg1: memref<128x32xf32, #tpu.memory_space<vmem>>, %arg2: memref<128x1xi32, #tpu.memory_space<vmem>>, %arg3: memref<1x1x128xi32, #tpu.memory_space<vmem>>, %arg4: memref<128x1xf32, #tpu.memory_space<vmem>>) attributes {dimension_semantics = [#tpu.dimension_semantics<parallel>], iteration_bounds = array<i64: 1>, scalar_prefetch = 0 : i64, scratch_operands = 0 : i64, tpu.core_type = #tpu.core_type<tc>, window_params = [{pipeline_mode = #tpu.pipeline_mode<synchronous>, transform_indices = @transform_0, window_bounds = array<i64: 128, 32>}, {transform_indices = @transform_1, window_bounds = array<i64: 128, 1>}, {pipeline_mode = #tpu.pipeline_mode<synchronous>, transform_indices = @transform_2, window_bounds = array<i64: 1, 1, 128>}, {transform_indices = @transform_3, window_bounds = array<i64: 128, 1>}]} {
    %c128_i32 = arith.constant 128 : i32
    %0 = arith.muli %arg0, %c128_i32 : i32
    %1 = tpu.assume_multiple %0, 128 : i32
    %2 = arith.index_cast %1 : i32 to index
    %c0 = arith.constant 0 : index
    %3 = vector.load %arg1[%2, %c0] : memref<128x32xf32, #tpu.memory_space<vmem>>, vector<128x32xf32>
    %cst = arith.constant 14.2857141 : f32
    %4 = vector.broadcast %cst : f32 to vector<128x32xf32>
    %5 = arith.mulf %3, %4 : vector<128x32xf32>
    %6 = tpu.iota {dimensions = array<i32: 0>} : vector<128x1xi32>
    %7 = vector.broadcast %1 : i32 to vector<128x1xi32>
    %8 = arith.addi %7, %6 : vector<128x1xi32>
    %c0_0 = arith.constant 0 : index
    %c0_1 = arith.constant 0 : index
    %9 = vector.load %arg2[%c0_0, %c0_1] : memref<128x1xi32, #tpu.memory_space<vmem>>, vector<128x1xi32>
    %cst_2 = arith.constant -1.000000e+30 : f32
    %10 = vector.broadcast %cst_2 : f32 to vector<128x1xf32>
    %cst_3 = arith.constant -1.000000e+30 : f32
    %c0_i32 = arith.constant 0 : i32
    %c128_i32_4 = arith.constant 128 : i32
    %11 = arith.muli %c0_i32, %c128_i32_4 : i32
    %12 = tpu.assume_multiple %11, 128 : i32
    %13 = arith.index_cast %12 : i32 to index
    %c0_5 = arith.constant 0 : index
    %14 = vector.load %arg1[%13, %c0_5] : memref<128x32xf32, #tpu.memory_space<vmem>>, vector<128x32xf32>
    %cst_6 = arith.constant dense<0.000000e+00> : vector<128x128xf32>
    %15 = tpu.matmul %5, %14, %cst_6 {dimension_numbers = #tpu.dot_dimension_numbers<[1], [1], [0], [0], [0, 0, 1, 0], [], []>} : vector<128x32xf32>, vector<128x32xf32>, vector<128x128xf32> -> vector<128x128xf32>
    %16 = tpu.iota {dimensions = array<i32: 1>} : vector<128x128xi32>
    %17 = vector.broadcast %12 : i32 to vector<128x128xi32>
    %18 = arith.addi %17, %16 : vector<128x128xi32>
    %c8_i32 = arith.constant 8 : i32
    %19 = vector.broadcast %c8_i32 : i32 to vector<128x128xi32>
    %20 = arith.cmpi slt, %18, %19 : vector<128x128xi32>
    %21 = vector.broadcast %cst_3 : f32 to vector<128x128xf32>
    %22 = arith.select %20, %15, %21 : vector<128x128xi1>, vector<128x128xf32>
    %cst_7 = arith.constant dense<0xFF800000> : vector<128xf32>
    %23 = vector.multi_reduction <maximumf>, %22, %cst_7 [1] : vector<128x128xf32> to vector<128xf32>
    %24 = vector.shape_cast %23 : vector<128xf32> to vector<128x1xf32>
    %25 = arith.maximumf %10, %24 : vector<128x1xf32>
    %c1_i32 = arith.constant 1 : i32
    %cst_8 = arith.constant 0.000000e+00 : f32
    %26 = vector.broadcast %cst_8 : f32 to vector<128x1xf32>
    %cst_9 = arith.constant 0.000000e+00 : f32
    %27 = vector.broadcast %cst_9 : f32 to vector<128x1xf32>
    %cst_10 = arith.constant 0.000000e+00 : f32
    %28 = vector.broadcast %cst_10 : f32 to vector<128x1xf32>
    %cst_11 = arith.constant -1.000000e+30 : f32
    %cst_12 = arith.constant 0.000000e+00 : f32
    %c0_i32_13 = arith.constant 0 : i32
    %c128_i32_14 = arith.constant 128 : i32
    %29 = arith.muli %c0_i32_13, %c128_i32_14 : i32
    %30 = tpu.assume_multiple %29, 128 : i32
    %31 = arith.index_cast %30 : i32 to index
    %c0_15 = arith.constant 0 : index
    %32 = vector.load %arg1[%31, %c0_15] : memref<128x32xf32, #tpu.memory_space<vmem>>, vector<128x32xf32>
    %cst_16 = arith.constant dense<0.000000e+00> : vector<128x128xf32>
    %33 = tpu.matmul %5, %32, %cst_16 {dimension_numbers = #tpu.dot_dimension_numbers<[1], [1], [0], [0], [0, 0, 1, 0], [], []>} : vector<128x32xf32>, vector<128x32xf32>, vector<128x128xf32> -> vector<128x128xf32>
    %34 = tpu.iota {dimensions = array<i32: 1>} : vector<128x128xi32>
    %35 = vector.broadcast %30 : i32 to vector<128x128xi32>
    %36 = arith.addi %35, %34 : vector<128x128xi32>
    %c8_i32_17 = arith.constant 8 : i32
    %37 = vector.broadcast %c8_i32_17 : i32 to vector<128x128xi32>
    %38 = arith.cmpi slt, %36, %37 : vector<128x128xi32>
    %39 = vector.broadcast %8 : vector<128x1xi32> to vector<128x128xi32>
    %40 = arith.cmpi ne, %36, %39 : vector<128x128xi32>
    %41 = arith.andi %40, %38 : vector<128x128xi1>
    %42 = arith.index_cast %c0_i32_13 : i32 to index
    %c0_18 = arith.constant 0 : index
    %c0_19 = arith.constant 0 : index
    %43 = vector.load %arg3[%42, %c0_18, %c0_19] : memref<1x1x128xi32, #tpu.memory_space<vmem>>, vector<1x1x128xi32>
    %44 = vector.shape_cast %43 : vector<1x1x128xi32> to vector<1x128xi32>
    %45 = vector.broadcast %9 : vector<128x1xi32> to vector<128x128xi32>
    %46 = vector.broadcast %44 : vector<1x128xi32> to vector<128x128xi32>
    %47 = arith.cmpi eq, %45, %46 : vector<128x128xi32>
    %48 = arith.andi %47, %41 : vector<128x128xi1>
    %49 = vector.broadcast %cst_11 : f32 to vector<128x128xf32>
    %50 = arith.select %38, %33, %49 : vector<128x128xi1>, vector<128x128xf32>
    %51 = vector.broadcast %25 : vector<128x1xf32> to vector<128x128xf32>
    %52 = arith.subf %50, %51 : vector<128x128xf32>
    %53 = math.exp %52 : vector<128x128xf32>
    %cst_20 = arith.constant 9.99999974E-6 : f32
    %54 = vector.broadcast %cst_20 : f32 to vector<128x128xf32>
    %55 = arith.addf %53, %54 : vector<128x128xf32>
    %56 = vector.broadcast %cst_12 : f32 to vector<128x128xf32>
    %57 = arith.select %41, %55, %56 : vector<128x128xi1>, vector<128x128xf32>
    %cst_21 = arith.constant dense<0.000000e+00> : vector<128xf32>
    %58 = vector.multi_reduction <add>, %57, %cst_21 [1] : vector<128x128xf32> to vector<128xf32>
    %59 = vector.shape_cast %58 : vector<128xf32> to vector<128x1xf32>
    %60 = arith.addf %26, %59 : vector<128x1xf32>
    %cst_22 = arith.constant 1.000000e+00 : f32
    %61 = vector.broadcast %cst_22 : f32 to vector<128x128xf32>
    %62 = vector.broadcast %cst_12 : f32 to vector<128x128xf32>
    %63 = arith.select %48, %61, %62 : vector<128x128xi1>, vector<128x128xf32>
    %cst_23 = arith.constant dense<0.000000e+00> : vector<128xf32>
    %64 = vector.multi_reduction <add>, %63, %cst_23 [1] : vector<128x128xf32> to vector<128xf32>
    %65 = vector.shape_cast %64 : vector<128xf32> to vector<128x1xf32>
    %66 = arith.addf %27, %65 : vector<128x1xf32>
    %67 = math.log %55 : vector<128x128xf32>
    %68 = vector.broadcast %cst_12 : f32 to vector<128x128xf32>
    %69 = arith.select %48, %67, %68 : vector<128x128xi1>, vector<128x128xf32>
    %cst_24 = arith.constant dense<0.000000e+00> : vector<128xf32>
    %70 = vector.multi_reduction <add>, %69, %cst_24 [1] : vector<128x128xf32> to vector<128xf32>
    %71 = vector.shape_cast %70 : vector<128xf32> to vector<128x1xf32>
    %72 = arith.addf %28, %71 : vector<128x1xf32>
    %c1_i32_25 = arith.constant 1 : i32
    %73 = math.log %60 : vector<128x1xf32>
    %74 = arith.divf %72, %66 : vector<128x1xf32>
    %75 = arith.subf %73, %74 : vector<128x1xf32>
    %c0_26 = arith.constant 0 : index
    %c0_27 = arith.constant 0 : index
    %76 = vector.load %arg4[%c0_26, %c0_27] : memref<128x1xf32, #tpu.memory_space<vmem>>, vector<128x1xf32>
    tpu.vector_store %arg4[%c0_26, %c0_27], %75 {strides = array<i32>} : memref<128x1xf32, #tpu.memory_space<vmem>>, vector<128x1xf32>,
    return
  }
  func.func @transform_0(%arg0: i32) -> (i32, i32) {
    %c0_i32 = arith.constant 0 : i32
    %c0_i32_0 = arith.constant 0 : i32
    %c0_i32_1 = arith.constant 0 : i32
    return %c0_i32, %c0_i32_0 : i32, i32
  }
  func.func @transform_1(%arg0: i32) -> (i32, i32) {
    %c0_i32 = arith.constant 0 : i32
    %c0_i32_0 = arith.constant 0 : i32
    return %arg0, %c0_i32 : i32, i32
  }
  func.func @transform_2(%arg0: i32) -> (i32, i32, i32) {
    %c0_i32 = arith.constant 0 : i32
    %c0_i32_0 = arith.constant 0 : i32
    %c0_i32_1 = arith.constant 0 : i32
    %c0_i32_2 = arith.constant 0 : i32
    return %c0_i32, %c0_i32_0, %c0_i32_1 : i32, i32, i32
  }
  func.func @transform_3(%arg0: i32) -> (i32, i32) {
    %c0_i32 = arith.constant 0 : i32
    %c0_i32_0 = arith.constant 0 : i32
    return %arg0, %c0_i32 : i32, i32
  }
}

</mosaic_0001>

<llo_original>
// kernel: supervised_contrastive_loss.1
$region0: #{supervised_contrastive_loss.1}
  #allocation0 [shape = 'u32[]', space=smem, size = 0x4, offset = 0x4, fixed_abs, tag = 'smem constant byte address 0x4 - core index']
  #allocation1 [shape = 'u32[144,128]{1,0:T(1,128)}', space=vmem, size = 0x12000, scoped, tag = 'internal scratch']
  %s0 = inlined_call_operand.vmem [shape: f32[128,32], index: 0, kind: input, shape index: {}]
  %s1 = inlined_call_operand.vmem [shape: s32[128,1], index: 1, kind: input, shape index: {}]
  %s2 = inlined_call_operand.vmem [shape: s32[1,1,128], index: 2, kind: input, shape index: {}]
  %s3 = inlined_call_operand.vmem [shape: f32[128,1], index: 3, kind: output, shape index: {}]
  %s4 = sld [smem:[#allocation0]]
  $region22: #{supervised_contrastive_loss.1} parent=0
    _
  %s6 = ssub.s32 1, %s4
  %s7 = scalar_select 0, %s6, %s4
  // Predicated region
  $region2: #{supervised_contrastive_loss.1} parent=0 // pred_check
    _
  $region3: #{supervised_contrastive_loss.1} parent=0 // pred_check_branch
    %9 = sbr.rel (0) target = $region5
  $region4: #{supervised_contrastive_loss.1} parent=0 // pred_region
    _
  $region5: #{supervised_contrastive_loss.1} parent=0 // pred_fallthru
    _
  // Predicated region
  $region6: #{supervised_contrastive_loss.1} parent=0 // pred_check
    _
  $region7: #{supervised_contrastive_loss.1} parent=0 // pred_check_branch
    %11 = sbr.rel (0) target = $region9
  $region8: #{supervised_contrastive_loss.1} parent=0 // pred_region
    _
  $region9: #{supervised_contrastive_loss.1} parent=0 // pred_fallthru
    _
  // Predicated region
  $region10: #{supervised_contrastive_loss.1} parent=0 // pred_check
    _
  $region11: #{supervised_contrastive_loss.1} parent=0 // pred_check_branch
    %13 = sbr.rel (0) target = $region13
  $region12: #{supervised_contrastive_loss.1} parent=0 // pred_region
    _
  $region13: #{supervised_contrastive_loss.1} parent=0 // pred_fallthru
    _
  %s14 = smul.u32 0, 128
  %s15 = scalar_lea.vmem %s0, %s14
  %v16 = vld [vmem:[%s15] sm:$0xff]
  %v17 = vld [vmem:[%s15 + $0x8] sm:$0xff]
  %v18 = vld [vmem:[%s15 + $0x10] sm:$0xff]
  %v19 = vld [vmem:[%s15 + $0x18] sm:$0xff]
  %v20 = vld [vmem:[%s15 + $0x20] sm:$0xff]
  %v21 = vld [vmem:[%s15 + $0x28] sm:$0xff]
  %v22 = vld [vmem:[%s15 + $0x30] sm:$0xff]
  %v23 = vld [vmem:[%s15 + $0x38] sm:$0xff]
  %v24 = vld [vmem:[%s15 + $0x40] sm:$0xff]
  %v25 = vld [vmem:[%s15 + $0x48] sm:$0xff]
  %v26 = vld [vmem:[%s15 + $0x50] sm:$0xff]
  %v27 = vld [vmem:[%s15 + $0x58] sm:$0xff]
  %v28 = vld [vmem:[%s15 + $0x60] sm:$0xff]
  %v29 = vld [vmem:[%s15 + $0x68] sm:$0xff]
  %v30 = vld [vmem:[%s15 + $0x70] sm:$0xff]
  %v31 = vld [vmem:[%s15 + $0x78] sm:$0xff]
  %v32 = vmul.f32 %v16, 14.285714
  %v33 = vmul.f32 %v17, 14.285714
  %v34 = vmul.f32 %v18, 14.285714
  %v35 = vmul.f32 %v19, 14.285714
  %v36 = vmul.f32 %v20, 14.285714
  %v37 = vmul.f32 %v21, 14.285714
  %v38 = vmul.f32 %v22, 14.285714
  %v39 = vmul.f32 %v23, 14.285714
  %v40 = vmul.f32 %v24, 14.285714
  %v41 = vmul.f32 %v25, 14.285714
  %v42 = vmul.f32 %v26, 14.285714
  %v43 = vmul.f32 %v27, 14.285714
  %v44 = vmul.f32 %v28, 14.285714
  %v45 = vmul.f32 %v29, 14.285714
  %v46 = vmul.f32 %v30, 14.285714
  %v47 = vmul.f32 %v31, 14.285714
  %v48 = vlaneseq
  %v49 = vshrl.u32 %v48, 7
  %v50 = vadd.s32 %v49, 8
  %v51 = vadd.s32 %v49, 16
  %v52 = vadd.s32 %v49, 24
  %v53 = vadd.s32 %v49, 32
  %v54 = vadd.s32 %v49, 40
  %v55 = vadd.s32 %v49, 48
  %v56 = vadd.s32 %v49, 56
  %v57 = vadd.s32 %v49, 64
  %v58 = vadd.s32 %v49, 72
  %v59 = vadd.s32 %v49, 80
  %v60 = vadd.s32 %v49, 88
  %v61 = vadd.s32 %v49, 96
  %v62 = vadd.s32 %v49, 104
  %v63 = vadd.s32 %v49, 112
  %v64 = vadd.s32 %v49, 120
  %v65 = vstv %s14
  %v66 = vadd.s32 %v65, %v49
  %v67 = vadd.s32 %v65, %v50
  %v68 = vadd.s32 %v65, %v51
  %v69 = vadd.s32 %v65, %v52
  %v70 = vadd.s32 %v65, %v53
  %v71 = vadd.s32 %v65, %v54
  %v72 = vadd.s32 %v65, %v55
  %v73 = vadd.s32 %v65, %v56
  %v74 = vadd.s32 %v65, %v57
  %v75 = vadd.s32 %v65, %v58
  %v76 = vadd.s32 %v65, %v59
  %v77 = vadd.s32 %v65, %v60
  %v78 = vadd.s32 %v65, %v61
  %v79 = vadd.s32 %v65, %v62
  %v80 = vadd.s32 %v65, %v63
  %v81 = vadd.s32 %v65, %v64
  %v82 = vld [vmem:[%s1] sm:$0xff]
  %v83 = vld [vmem:[%s1 + $0x8] sm:$0xff]
  %v84 = vld [vmem:[%s1 + $0x10] sm:$0xff]
  %v85 = vld [vmem:[%s1 + $0x18] sm:$0xff]
  %v86 = vld [vmem:[%s1 + $0x20] sm:$0xff]
  %v87 = vld [vmem:[%s1 + $0x28] sm:$0xff]
  %v88 = vld [vmem:[%s1 + $0x30] sm:$0xff]
  %v89 = vld [vmem:[%s1 + $0x38] sm:$0xff]
  %v90 = vld [vmem:[%s1 + $0x40] sm:$0xff]
  %v91 = vld [vmem:[%s1 + $0x48] sm:$0xff]
  %v92 = vld [vmem:[%s1 + $0x50] sm:$0xff]
  %v93 = vld [vmem:[%s1 + $0x58] sm:$0xff]
  %v94 = vld [vmem:[%s1 + $0x60] sm:$0xff]
  %v95 = vld [vmem:[%s1 + $0x68] sm:$0xff]
  %v96 = vld [vmem:[%s1 + $0x70] sm:$0xff]
  %v97 = vld [vmem:[%s1 + $0x78] sm:$0xff]
  %v98 = vld [vmem:[%s0] sm:$0xff]
  %v99 = vld [vmem:[%s0 + $0x8] sm:$0xff]
  %v100 = vld [vmem:[%s0 + $0x10] sm:$0xff]
  %v101 = vld [vmem:[%s0 + $0x18] sm:$0xff]
  %v102 = vld [vmem:[%s0 + $0x20] sm:$0xff]
  %v103 = vld [vmem:[%s0 + $0x28] sm:$0xff]
  %v104 = vld [vmem:[%s0 + $0x30] sm:$0xff]
  %v105 = vld [vmem:[%s0 + $0x38] sm:$0xff]
  %v106 = vld [vmem:[%s0 + $0x40] sm:$0xff]
  %v107 = vld [vmem:[%s0 + $0x48] sm:$0xff]
  %v108 = vld [vmem:[%s0 + $0x50] sm:$0xff]
  %v109 = vld [vmem:[%s0 + $0x58] sm:$0xff]
  %v110 = vld [vmem:[%s0 + $0x60] sm:$0xff]
  %v111 = vld [vmem:[%s0 + $0x68] sm:$0xff]
  %v112 = vld [vmem:[%s0 + $0x70] sm:$0xff]
  %v113 = vld [vmem:[%s0 + $0x78] sm:$0xff]
  %vm114 = vcmask 261120
  %v116 = vsel %vm114, %v32, 0
  %v119 = vsel %vm114, %v33, 0
  %v122 = vsel %vm114, %v34, 0
  %v125 = vsel %vm114, %v35, 0
  %v128 = vsel %vm114, %v36, 0
  %v131 = vsel %vm114, %v37, 0
  %v134 = vsel %vm114, %v38, 0
  %v137 = vsel %vm114, %v39, 0
  %v140 = vsel %vm114, %v40, 0
  %v143 = vsel %vm114, %v41, 0
  %v146 = vsel %vm114, %v42, 0
  %v149 = vsel %vm114, %v43, 0
  %v152 = vsel %vm114, %v44, 0
  %v155 = vsel %vm114, %v45, 0
  %v158 = vsel %vm114, %v46, 0
  %v161 = vsel %vm114, %v47, 0
  %v164 = vsel %vm114, %v98, 0
  %v167 = vsel %vm114, %v99, 0
  %v170 = vsel %vm114, %v100, 0
  %v173 = vsel %vm114, %v101, 0
  %v176 = vsel %vm114, %v102, 0
  %v179 = vsel %vm114, %v103, 0
  %v182 = vsel %vm114, %v104, 0
  %v185 = vsel %vm114, %v105, 0
  %v188 = vsel %vm114, %v106, 0
  %v191 = vsel %vm114, %v107, 0
  %v194 = vsel %vm114, %v108, 0
  %v197 = vsel %vm114, %v109, 0
  %v200 = vsel %vm114, %v110, 0
  %v203 = vsel %vm114, %v111, 0
  %v206 = vsel %vm114, %v112, 0
  %v209 = vsel %vm114, %v113, 0
  %211 = vmatprep.subr.mxu0 0.0
  %212 = vmatpush1.xpose.msra.mxu0 %v164
  %213 = vmatprep.subr.mxu0 0.0
  %214 = vmatpush1.xpose.msra.mxu0 %v167
  %215 = vmatprep.subr.mxu0 0.0
  %216 = vmatpush1.xpose.msra.mxu0 %v170
  %217 = vmatprep.subr.mxu0 0.0
  %218 = vmatpush1.xpose.msra.mxu0 %v173
  %219 = vmatprep.subr.mxu0 0.0
  %220 = vmatpush1.xpose.msra.mxu0 %v176
  %221 = vmatprep.subr.mxu0 0.0
  %222 = vmatpush1.xpose.msra.mxu0 %v179
  %223 = vmatprep.subr.mxu0 0.0
  %224 = vmatpush1.xpose.msra.mxu0 %v182
  %225 = vmatprep.subr.mxu0 0.0
  %226 = vmatpush1.xpose.msra.mxu0 %v185
  %227 = vmatprep.subr.mxu0 0.0
  %228 = vmatpush1.xpose.msra.mxu0 %v188
  %229 = vmatprep.subr.mxu0 0.0
  %230 = vmatpush1.xpose.msra.mxu0 %v191
  %231 = vmatprep.subr.mxu0 0.0
  %232 = vmatpush1.xpose.msra.mxu0 %v194
  %233 = vmatprep.subr.mxu0 0.0
  %234 = vmatpush1.xpose.msra.mxu0 %v197
  %235 = vmatprep.subr.mxu0 0.0
  %236 = vmatpush1.xpose.msra.mxu0 %v200
  %237 = vmatprep.subr.mxu0 0.0
  %238 = vmatpush1.xpose.msra.mxu0 %v203
  %239 = vmatprep.subr.mxu0 0.0
  %240 = vmatpush1.xpose.msra.mxu0 %v206
  %241 = vmatprep.subr.mxu0 0.0
  %242 = vmatpush1.xpose.msra.mxu0 %v209
  %243 = vmatprep.subr.mxu0 0.0
  %244 = vmatpush1.xpose.msra.mxu0 0.0
  %245 = vmatprep.subr.mxu0 0.0
  %246 = vmatpush1.xpose.msra.mxu0 0.0
  %247 = vmatprep.subr.mxu0 0.0
  %248 = vmatpush1.xpose.msra.mxu0 0.0
  %249 = vmatprep.subr.mxu0 0.0
  %250 = vmatpush1.xpose.msra.mxu0 0.0
  %251 = vmatprep.subr.mxu0 0.0
  %252 = vmatpush1.xpose.msra.mxu0 0.0
  %253 = vmatprep.subr.mxu0 0.0
  %254 = vmatpush1.xpose.msra.mxu0 0.0
  %255 = vmatprep.subr.mxu0 0.0
  %256 = vmatpush1.xpose.msra.mxu0 0.0
  %257 = vmatprep.subr.mxu0 0.0
  %258 = vmatpush1.xpose.msra.mxu0 0.0
  %259 = vmatprep.subr.mxu0 0.0
  %260 = vmatpush1.xpose.msra.mxu0 0.0
  %261 = vmatprep.subr.mxu0 0.0
  %262 = vmatpush1.xpose.msra.mxu0 0.0
  %263 = vmatprep.subr.mxu0 0.0
  %264 = vmatpush1.xpose.msra.mxu0 0.0
  %265 = vmatprep.subr.mxu0 0.0
  %266 = vmatpush1.xpose.msra.mxu0 0.0
  %267 = vmatprep.subr.mxu0 0.0
  %268 = vmatpush1.xpose.msra.mxu0 0.0
  %269 = vmatprep.subr.mxu0 0.0
  %270 = vmatpush1.xpose.msra.mxu0 0.0
  %271 = vmatprep.subr.mxu0 0.0
  %272 = vmatpush1.xpose.msra.mxu0 0.0
  %273 = vmatprep.subr.mxu0 0.0
  %274 = vmatpush1.xpose.msra.mxu0 0.0
  %275 = vmatprep.mubr.f32.mxu0 0.0
  %276 = vmatmul.mubr.f32.gmra.mrb[0].mxu0 %v116
  %v277 = vpop.f32.mrb[0].mxu0
  %v278 = vadd.f32 0.0, %v277
  %v279 = vpop.f32.mrb[0].mxu0
  %280 = vmatprep.mubr.f32.mxu0 0.0
  %281 = vmatmul.mubr.f32.gmra.mrb[0].mxu0 %v119
  %v282 = vpop.f32.mrb[0].mxu0
  %v283 = vadd.f32 0.0, %v282
  %v284 = vpop.f32.mrb[0].mxu0
  %285 = vmatprep.mubr.f32.mxu0 0.0
  %286 = vmatmul.mubr.f32.gmra.mrb[0].mxu0 %v122
  %v287 = vpop.f32.mrb[0].mxu0
  %v288 = vadd.f32 0.0, %v287
  %v289 = vpop.f32.mrb[0].mxu0
  %290 = vmatprep.mubr.f32.mxu0 0.0
  %291 = vmatmul.mubr.f32.gmra.mrb[0].mxu0 %v125
  %v292 = vpop.f32.mrb[0].mxu0
  %v293 = vadd.f32 0.0, %v292
  %v294 = vpop.f32.mrb[0].mxu0
  %295 = vmatprep.mubr.f32.mxu0 0.0
  %296 = vmatmul.mubr.f32.gmra.mrb[0].mxu0 %v128
  %v297 = vpop.f32.mrb[0].mxu0
  %v298 = vadd.f32 0.0, %v297
  %v299 = vpop.f32.mrb[0].mxu0
  %300 = vmatprep.mubr.f32.mxu0 0.0
  %301 = vmatmul.mubr.f32.gmra.mrb[0].mxu0 %v131
  %v302 = vpop.f32.mrb[0].mxu0
  %v303 = vadd.f32 0.0, %v302
  %v304 = vpop.f32.mrb[0].mxu0
  %305 = vmatprep.mubr.f32.mxu0 0.0
  %306 = vmatmul.mubr.f32.gmra.mrb[0].mxu0 %v134
  %v307 = vpop.f32.mrb[0].mxu0
  %v308 = vadd.f32 0.0, %v307
  %v309 = vpop.f32.mrb[0].mxu0
  %310 = vmatprep.mubr.f32.mxu0 0.0
  %311 = vmatmul.mubr.f32.gmra.mrb[0].mxu0 %v137
  %v312 = vpop.f32.mrb[0].mxu0
  %v313 = vadd.f32 0.0, %v312
  %v314 = vpop.f32.mrb[0].mxu0
  %315 = vmatprep.mubr.f32.mxu0 0.0
  %316 = vmatmul.mubr.f32.gmra.mrb[0].mxu0 %v140
  %v317 = vpop.f32.mrb[0].mxu0
  %v318 = vadd.f32 0.0, %v317
  %v319 = vpop.f32.mrb[0].mxu0
  %320 = vmatprep.mubr.f32.mxu0 0.0
  %321 = vmatmul.mubr.f32.gmra.mrb[0].mxu0 %v143
  %v322 = vpop.f32.mrb[0].mxu0
  %v323 = vadd.f32 0.0, %v322
  %v324 = vpop.f32.mrb[0].mxu0
  %325 = vmatprep.mubr.f32.mxu0 0.0
  %326 = vmatmul.mubr.f32.gmra.mrb[0].mxu0 %v146
  %v327 = vpop.f32.mrb[0].mxu0
  %v328 = vadd.f32 0.0, %v327
  %v329 = vpop.f32.mrb[0].mxu0
  %330 = vmatprep.mubr.f32.mxu0 0.0
  %331 = vmatmul.mubr.f32.gmra.mrb[0].mxu0 %v149
  %v332 = vpop.f32.mrb[0].mxu0
  %v333 = vadd.f32 0.0, %v332
  %v334 = vpop.f32.mrb[0].mxu0
  %335 = vmatprep.mubr.f32.mxu0 0.0
  %336 = vmatmul.mubr.f32.gmra.mrb[0].mxu0 %v152
  %v337 = vpop.f32.mrb[0].mxu0
  %v338 = vadd.f32 0.0, %v337
  %v339 = vpop.f32.mrb[0].mxu0
  %340 = vmatprep.mubr.f32.mxu0 0.0
  %341 = vmatmul.mubr.f32.gmra.mrb[0].mxu0 %v155
  %v342 = vpop.f32.mrb[0].mxu0
  %v343 = vadd.f32 0.0, %v342
  %v344 = vpop.f32.mrb[0].mxu0
  %345 = vmatprep.mubr.f32.mxu0 0.0
  %346 = vmatmul.mubr.f32.gmra.mrb[0].mxu0 %v158
  %v347 = vpop.f32.mrb[0].mxu0
  %v348 = vadd.f32 0.0, %v347
  %v349 = vpop.f32.mrb[0].mxu0
  %350 = vmatprep.mubr.f32.mxu0 0.0
  %351 = vmatmul.mubr.f32.gmra.mrb[0].mxu0 %v161
  %v352 = vpop.f32.mrb[0].mxu0
  %v353 = vadd.f32 0.0, %v352
  %v354 = vpop.f32.mrb[0].mxu0
  %355 = vdwg.mxu0
  %v356 = vlaneseq
  %v357 = vand.u32 %v356, 127
  %v358 = vstv 0
  %v359 = vadd.s32 %v358, %v357
  %vm360 = vcmp.lt.s32.totalorder %v359, 8
  %v361 = vsel %vm360, %v278, -1e+30
  %v362 = vsel %vm360, %v283, -1e+30
  %v363 = vsel %vm360, %v288, -1e+30
  %v364 = vsel %vm360, %v293, -1e+30
  %v365 = vsel %vm360, %v298, -1e+30
  %v366 = vsel %vm360, %v303, -1e+30
  %v367 = vsel %vm360, %v308, -1e+30
  %v368 = vsel %vm360, %v313, -1e+30
  %v369 = vsel %vm360, %v318, -1e+30
  %v370 = vsel %vm360, %v323, -1e+30
  %v371 = vsel %vm360, %v328, -1e+30
  %v372 = vsel %vm360, %v333, -1e+30
  %v373 = vsel %vm360, %v338, -1e+30
  %v374 = vsel %vm360, %v343, -1e+30
  %v375 = vsel %vm360, %v348, -1e+30
  %v376 = vsel %vm360, %v353, -1e+30
  %377 = vmax.xlane.f32.xlu0 %v361
  %v378 = vpop.xlane.xlu0 %377
  %379 = vmax.xlane.f32.xlu0 %v362
  %v380 = vpop.xlane.xlu0 %379
  %381 = vmax.xlane.f32.xlu0 %v363
  %v382 = vpop.xlane.xlu0 %381
  %383 = vmax.xlane.f32.xlu0 %v364
  %v384 = vpop.xlane.xlu0 %383
  %385 = vmax.xlane.f32.xlu0 %v365
  %v386 = vpop.xlane.xlu0 %385
  %387 = vmax.xlane.f32.xlu0 %v366
  %v388 = vpop.xlane.xlu0 %387
  %389 = vmax.xlane.f32.xlu0 %v367
  %v390 = vpop.xlane.xlu0 %389
  %391 = vmax.xlane.f32.xlu0 %v368
  %v392 = vpop.xlane.xlu0 %391
  %393 = vmax.xlane.f32.xlu0 %v369
  %v394 = vpop.xlane.xlu0 %393
  %395 = vmax.xlane.f32.xlu0 %v370
  %v396 = vpop.xlane.xlu0 %395
  %397 = vmax.xlane.f32.xlu0 %v371
  %v398 = vpop.xlane.xlu0 %397
  %399 = vmax.xlane.f32.xlu0 %v372
  %v400 = vpop.xlane.xlu0 %399
  %401 = vmax.xlane.f32.xlu0 %v373
  %v402 = vpop.xlane.xlu0 %401
  %403 = vmax.xlane.f32.xlu0 %v374
  %v404 = vpop.xlane.xlu0 %403
  %405 = vmax.xlane.f32.xlu0 %v375
  %v406 = vpop.xlane.xlu0 %405
  %407 = vmax.xlane.f32.xlu0 %v376
  %v408 = vpop.xlane.xlu0 %407
  %v409 = vmax.f32 %v378, -1e+30
  %v410 = vmax.f32 %v380, -1e+30
  %v411 = vmax.f32 %v382, -1e+30
  %v412 = vmax.f32 %v384, -1e+30
  %v413 = vmax.f32 %v386, -1e+30
  %v414 = vmax.f32 %v388, -1e+30
  %v415 = vmax.f32 %v390, -1e+30
  %v416 = vmax.f32 %v392, -1e+30
  %v417 = vmax.f32 %v394, -1e+30
  %v418 = vmax.f32 %v396, -1e+30
  %v419 = vmax.f32 %v398, -1e+30
  %v420 = vmax.f32 %v400, -1e+30
  %v421 = vmax.f32 %v402, -1e+30
  %v422 = vmax.f32 %v404, -1e+30
  %v423 = vmax.f32 %v406, -1e+30
  %v424 = vmax.f32 %v408, -1e+30
  %vm425 = vcmp.ne.s32.totalorder %v359, %v66
  %vm426 = vcmp.ne.s32.totalorder %v359, %v67
  %vm427 = vcmp.ne.s32.totalorder %v359, %v68
  %vm428 = vcmp.ne.s32.totalorder %v359, %v69
  %vm429 = vcmp.ne.s32.totalorder %v359, %v70
  %vm430 = vcmp.ne.s32.totalorder %v359, %v71
  %vm431 = vcmp.ne.s32.totalorder %v359, %v72
  %vm432 = vcmp.ne.s32.totalorder %v359, %v73
  %vm433 = vcmp.ne.s32.totalorder %v359, %v74
  %vm434 = vcmp.ne.s32.totalorder %v359, %v75
  %vm435 = vcmp.ne.s32.totalorder %v359, %v76
  %vm436 = vcmp.ne.s32.totalorder %v359, %v77
  %vm437 = vcmp.ne.s32.totalorder %v359, %v78
  %vm438 = vcmp.ne.s32.totalorder %v359, %v79
  %vm439 = vcmp.ne.s32.totalorder %v359, %v80
  %vm440 = vcmp.ne.s32.totalorder %v359, %v81
  %vm441 = vmand %vm425, %vm360
  %vm442 = vmand %vm426, %vm360
  %vm443 = vmand %vm427, %vm360
  %vm444 = vmand %vm428, %vm360
  %vm445 = vmand %vm429, %vm360
  %vm446 = vmand %vm430, %vm360
  %vm447 = vmand %vm431, %vm360
  %vm448 = vmand %vm432, %vm360
  %vm449 = vmand %vm433, %vm360
  %vm450 = vmand %vm434, %vm360
  %vm451 = vmand %vm435, %vm360
  %vm452 = vmand %vm436, %vm360
  %vm453 = vmand %vm437, %vm360
  %vm454 = vmand %vm438, %vm360
  %vm455 = vmand %vm439, %vm360
  %vm456 = vmand %vm440, %vm360
  %v457 = vld [vmem:[%s2] sm:$0x1]
  %458 = vset.pattern.permute.xlu0 0
  %459 = vperm.xlu0 %458, %v82
  %v460 = vpop.permute.xlu0 %459
  %461 = vset.pattern.permute.xlu0 0
  %462 = vperm.xlu0 %461, %v83
  %v463 = vpop.permute.xlu0 %462
  %464 = vset.pattern.permute.xlu0 0
  %465 = vperm.xlu0 %464, %v84
  %v466 = vpop.permute.xlu0 %465
  %467 = vset.pattern.permute.xlu0 0
  %468 = vperm.xlu0 %467, %v85
  %v469 = vpop.permute.xlu0 %468
  %470 = vset.pattern.permute.xlu0 0
  %471 = vperm.xlu0 %470, %v86
  %v472 = vpop.permute.xlu0 %471
  %473 = vset.pattern.permute.xlu0 0
  %474 = vperm.xlu0 %473, %v87
  %v475 = vpop.permute.xlu0 %474
  %476 = vset.pattern.permute.xlu0 0
  %477 = vperm.xlu0 %476, %v88
  %v478 = vpop.permute.xlu0 %477
  %479 = vset.pattern.permute.xlu0 0
  %480 = vperm.xlu0 %479, %v89
  %v481 = vpop.permute.xlu0 %480
  %482 = vset.pattern.permute.xlu0 0
  %483 = vperm.xlu0 %482, %v90
  %v484 = vpop.permute.xlu0 %483
  %485 = vset.pattern.permute.xlu0 0
  %486 = vperm.xlu0 %485, %v91
  %v487 = vpop.permute.xlu0 %486
  %488 = vset.pattern.permute.xlu0 0
  %489 = vperm.xlu0 %488, %v92
  %v490 = vpop.permute.xlu0 %489
  %491 = vset.pattern.permute.xlu0 0
  %492 = vperm.xlu0 %491, %v93
  %v493 = vpop.permute.xlu0 %492
  %494 = vset.pattern.permute.xlu0 0
  %495 = vperm.xlu0 %494, %v94
  %v496 = vpop.permute.xlu0 %495
  %497 = vset.pattern.permute.xlu0 0
  %498 = vperm.xlu0 %497, %v95
  %v499 = vpop.permute.xlu0 %498
  %500 = vset.pattern.permute.xlu0 0
  %501 = vperm.xlu0 %500, %v96
  %v502 = vpop.permute.xlu0 %501
  %503 = vset.pattern.permute.xlu0 0
  %504 = vperm.xlu0 %503, %v97
  %v505 = vpop.permute.xlu0 %504
  %v506 = vlaneseq
  %v507 = vshrl.u32 %v506, 7
  %v508 = vsub.s32 0, %v507
  %v509 = vrot.slane %v457, %v508
  %vm510 = vcmp.eq.s32.totalorder %v460, %v509
  %vm511 = vcmp.eq.s32.totalorder %v463, %v509
  %vm512 = vcmp.eq.s32.totalorder %v466, %v509
  %vm513 = vcmp.eq.s32.totalorder %v469, %v509
  %vm514 = vcmp.eq.s32.totalorder %v472, %v509
  %vm515 = vcmp.eq.s32.totalorder %v475, %v509
  %vm516 = vcmp.eq.s32.totalorder %v478, %v509
  %vm517 = vcmp.eq.s32.totalorder %v481, %v509
  %vm518 = vcmp.eq.s32.totalorder %v484, %v509
  %vm519 = vcmp.eq.s32.totalorder %v487, %v509
  %vm520 = vcmp.eq.s32.totalorder %v490, %v509
  %vm521 = vcmp.eq.s32.totalorder %v493, %v509
  %vm522 = vcmp.eq.s32.totalorder %v496, %v509
  %vm523 = vcmp.eq.s32.totalorder %v499, %v509
  %vm524 = vcmp.eq.s32.totalorder %v502, %v509
  %vm525 = vcmp.eq.s32.totalorder %v505, %v509
  %vm526 = vmand %vm510, %vm441
  %vm527 = vmand %vm511, %vm442
  %vm528 = vmand %vm512, %vm443
  %vm529 = vmand %vm513, %vm444
  %vm530 = vmand %vm514, %vm445
  %vm531 = vmand %vm515, %vm446
  %vm532 = vmand %vm516, %vm447
  %vm533 = vmand %vm517, %vm448
  %vm534 = vmand %vm518, %vm449
  %vm535 = vmand %vm519, %vm450
  %vm536 = vmand %vm520, %vm451
  %vm537 = vmand %vm521, %vm452
  %vm538 = vmand %vm522, %vm453
  %vm539 = vmand %vm523, %vm454
  %vm540 = vmand %vm524, %vm455
  %vm541 = vmand %vm525, %vm456
  %v542 = vsub.f32 %v361, %v409
  %v543 = vsub.f32 %v362, %v410
  %v544 = vsub.f32 %v363, %v411
  %v545 = vsub.f32 %v364, %v412
  %v546 = vsub.f32 %v365, %v413
  %v547 = vsub.f32 %v366, %v414
  %v548 = vsub.f32 %v367, %v415
  %v549 = vsub.f32 %v368, %v416
  %v550 = vsub.f32 %v369, %v417
  %v551 = vsub.f32 %v370, %v418
  %v552 = vsub.f32 %v371, %v419
  %v553 = vsub.f32 %v372, %v420
  %v554 = vsub.f32 %v373, %v421
  %v555 = vsub.f32 %v374, %v422
  %v556 = vsub.f32 %v375, %v423
  %v557 = vsub.f32 %v376, %v424
  %v558 = vmul.f32 %v542, 1.442695
  %v559 = vpow.pop %v558
  %v560 = vmul.f32 %v543, 1.442695
  %v561 = vpow.pop %v560
  %v562 = vmul.f32 %v544, 1.442695
  %v563 = vpow.pop %v562
  %v564 = vmul.f32 %v545, 1.442695
  %v565 = vpow.pop %v564
  %v566 = vmul.f32 %v546, 1.442695
  %v567 = vpow.pop %v566
  %v568 = vmul.f32 %v547, 1.442695
  %v569 = vpow.pop %v568
  %v570 = vmul.f32 %v548, 1.442695
  %v571 = vpow.pop %v570
  %v572 = vmul.f32 %v549, 1.442695
  %v573 = vpow.pop %v572
  %v574 = vmul.f32 %v550, 1.442695
  %v575 = vpow.pop %v574
  %v576 = vmul.f32 %v551, 1.442695
  %v577 = vpow.pop %v576
  %v578 = vmul.f32 %v552, 1.442695
  %v579 = vpow.pop %v578
  %v580 = vmul.f32 %v553, 1.442695
  %v581 = vpow.pop %v580
  %v582 = vmul.f32 %v554, 1.442695
  %v583 = vpow.pop %v582
  %v584 = vmul.f32 %v555, 1.442695
  %v585 = vpow.pop %v584
  %v586 = vmul.f32 %v556, 1.442695
  %v587 = vpow.pop %v586
  %v588 = vmul.f32 %v557, 1.442695
  %v589 = vpow.pop %v588
  %v590 = vadd.f32 %v559, 1e-05
  %v591 = vadd.f32 %v561, 1e-05
  %v592 = vadd.f32 %v563, 1e-05
  %v593 = vadd.f32 %v565, 1e-05
  %v594 = vadd.f32 %v567, 1e-05
  %v595 = vadd.f32 %v569, 1e-05
  %v596 = vadd.f32 %v571, 1e-05
  %v597 = vadd.f32 %v573, 1e-05
  %v598 = vadd.f32 %v575, 1e-05
  %v599 = vadd.f32 %v577, 1e-05
  %v600 = vadd.f32 %v579, 1e-05
  %v601 = vadd.f32 %v581, 1e-05
  %v602 = vadd.f32 %v583, 1e-05
  %v603 = vadd.f32 %v585, 1e-05
  %v604 = vadd.f32 %v587, 1e-05
  %v605 = vadd.f32 %v589, 1e-05
  %v606 = vsel %vm441, %v590, 0.0
  %v607 = vsel %vm442, %v591, 0.0
  %v608 = vsel %vm443, %v592, 0.0
  %v609 = vsel %vm444, %v593, 0.0
  %v610 = vsel %vm445, %v594, 0.0
  %v611 = vsel %vm446, %v595, 0.0
  %v612 = vsel %vm447, %v596, 0.0
  %v613 = vsel %vm448, %v597, 0.0
  %v614 = vsel %vm449, %v598, 0.0
  %v615 = vsel %vm450, %v599, 0.0
  %v616 = vsel %vm451, %v600, 0.0
  %v617 = vsel %vm452, %v601, 0.0
  %v618 = vsel %vm453, %v602, 0.0
  %v619 = vsel %vm454, %v603, 0.0
  %v620 = vsel %vm455, %v604, 0.0
  %v621 = vsel %vm456, %v605, 0.0
  %622 = vadd.xlane.f32.xlu0 %v606
  %v623 = vpop.xlane.xlu0 %622
  %624 = vadd.xlane.f32.xlu0 %v607
  %v625 = vpop.xlane.xlu0 %624
  %626 = vadd.xlane.f32.xlu0 %v608
  %v627 = vpop.xlane.xlu0 %626
  %628 = vadd.xlane.f32.xlu0 %v609
  %v629 = vpop.xlane.xlu0 %628
  %630 = vadd.xlane.f32.xlu0 %v610
  %v631 = vpop.xlane.xlu0 %630
  %632 = vadd.xlane.f32.xlu0 %v611
  %v633 = vpop.xlane.xlu0 %632
  %634 = vadd.xlane.f32.xlu0 %v612
  %v635 = vpop.xlane.xlu0 %634
  %636 = vadd.xlane.f32.xlu0 %v613
  %v637 = vpop.xlane.xlu0 %636
  %638 = vadd.xlane.f32.xlu0 %v614
  %v639 = vpop.xlane.xlu0 %638
  %640 = vadd.xlane.f32.xlu0 %v615
  %v641 = vpop.xlane.xlu0 %640
  %642 = vadd.xlane.f32.xlu0 %v616
  %v643 = vpop.xlane.xlu0 %642
  %644 = vadd.xlane.f32.xlu0 %v617
  %v645 = vpop.xlane.xlu0 %644
  %646 = vadd.xlane.f32.xlu0 %v618
  %v647 = vpop.xlane.xlu0 %646
  %648 = vadd.xlane.f32.xlu0 %v619
  %v649 = vpop.xlane.xlu0 %648
  %650 = vadd.xlane.f32.xlu0 %v620
  %v651 = vpop.xlane.xlu0 %650
  %652 = vadd.xlane.f32.xlu0 %v621
  %v653 = vpop.xlane.xlu0 %652
  %v654 = vadd.f32 %v623, 0.0
  %v655 = vadd.f32 %v625, 0.0
  %v656 = vadd.f32 %v627, 0.0
  %v657 = vadd.f32 %v629, 0.0
  %v658 = vadd.f32 %v631, 0.0
  %v659 = vadd.f32 %v633, 0.0
  %v660 = vadd.f32 %v635, 0.0
  %v661 = vadd.f32 %v637, 0.0
  %v662 = vadd.f32 %v639, 0.0
  %v663 = vadd.f32 %v641, 0.0
  %v664 = vadd.f32 %v643, 0.0
  %v665 = vadd.f32 %v645, 0.0
  %v666 = vadd.f32 %v647, 0.0
  %v667 = vadd.f32 %v649, 0.0
  %v668 = vadd.f32 %v651, 0.0
  %v669 = vadd.f32 %v653, 0.0
  %v670 = vsel %vm526, 1.0, 0.0
  %v671 = vsel %vm527, 1.0, 0.0
  %v672 = vsel %vm528, 1.0, 0.0
  %v673 = vsel %vm529, 1.0, 0.0
  %v674 = vsel %vm530, 1.0, 0.0
  %v675 = vsel %vm531, 1.0, 0.0
  %v676 = vsel %vm532, 1.0, 0.0
  %v677 = vsel %vm533, 1.0, 0.0
  %v678 = vsel %vm534, 1.0, 0.0
  %v679 = vsel %vm535, 1.0, 0.0
  %v680 = vsel %vm536, 1.0, 0.0
  %v681 = vsel %vm537, 1.0, 0.0
  %v682 = vsel %vm538, 1.0, 0.0
  %v683 = vsel %vm539, 1.0, 0.0
  %v684 = vsel %vm540, 1.0, 0.0
  %v685 = vsel %vm541, 1.0, 0.0
  %686 = vadd.xlane.f32.xlu0 %v670
  %v687 = vpop.xlane.xlu0 %686
  %688 = vadd.xlane.f32.xlu0 %v671
  %v689 = vpop.xlane.xlu0 %688
  %690 = vadd.xlane.f32.xlu0 %v672
  %v691 = vpop.xlane.xlu0 %690
  %692 = vadd.xlane.f32.xlu0 %v673
  %v693 = vpop.xlane.xlu0 %692
  %694 = vadd.xlane.f32.xlu0 %v674
  %v695 = vpop.xlane.xlu0 %694
  %696 = vadd.xlane.f32.xlu0 %v675
  %v697 = vpop.xlane.xlu0 %696
  %698 = vadd.xlane.f32.xlu0 %v676
  %v699 = vpop.xlane.xlu0 %698
  %700 = vadd.xlane.f32.xlu0 %v677
  %v701 = vpop.xlane.xlu0 %700
  %702 = vadd.xlane.f32.xlu0 %v678
  %v703 = vpop.xlane.xlu0 %702
  %704 = vadd.xlane.f32.xlu0 %v679
  %v705 = vpop.xlane.xlu0 %704
  %706 = vadd.xlane.f32.xlu0 %v680
  %v707 = vpop.xlane.xlu0 %706
  %708 = vadd.xlane.f32.xlu0 %v681
  %v709 = vpop.xlane.xlu0 %708
  %710 = vadd.xlane.f32.xlu0 %v682
  %v711 = vpop.xlane.xlu0 %710
  %712 = vadd.xlane.f32.xlu0 %v683
  %v713 = vpop.xlane.xlu0 %712
  %714 = vadd.xlane.f32.xlu0 %v684
  %v715 = vpop.xlane.xlu0 %714
  %716 = vadd.xlane.f32.xlu0 %v685
  %v717 = vpop.xlane.xlu0 %716
  %v718 = vadd.f32 %v687, 0.0
  %v719 = vadd.f32 %v689, 0.0
  %v720 = vadd.f32 %v691, 0.0
  %v721 = vadd.f32 %v693, 0.0
  %v722 = vadd.f32 %v695, 0.0
  %v723 = vadd.f32 %v697, 0.0
  %v724 = vadd.f32 %v699, 0.0
  %v725 = vadd.f32 %v701, 0.0
  %v726 = vadd.f32 %v703, 0.0
  %v727 = vadd.f32 %v705, 0.0
  %v728 = vadd.f32 %v707, 0.0
  %v729 = vadd.f32 %v709, 0.0
  %v730 = vadd.f32 %v711, 0.0
  %v731 = vadd.f32 %v713, 0.0
  %v732 = vadd.f32 %v715, 0.0
  %v733 = vadd.f32 %v717, 0.0
  %v734 = vlog2.pop %v590
  %v735 = vmul.f32 %v734, 0.6931472
  %v736 = vlog2.pop %v591
  %v737 = vmul.f32 %v736, 0.6931472
  %v738 = vlog2.pop %v592
  %v739 = vmul.f32 %v738, 0.6931472
  %v740 = vlog2.pop %v593
  %v741 = vmul.f32 %v740, 0.6931472
  %v742 = vlog2.pop %v594
  %v743 = vmul.f32 %v742, 0.6931472
  %v744 = vlog2.pop %v595
  %v745 = vmul.f32 %v744, 0.6931472
  %v746 = vlog2.pop %v596
  %v747 = vmul.f32 %v746, 0.6931472
  %v748 = vlog2.pop %v597
  %v749 = vmul.f32 %v748, 0.6931472
  %v750 = vlog2.pop %v598
  %v751 = vmul.f32 %v750, 0.6931472
  %v752 = vlog2.pop %v599
  %v753 = vmul.f32 %v752, 0.6931472
  %v754 = vlog2.pop %v600
  %v755 = vmul.f32 %v754, 0.6931472
  %v756 = vlog2.pop %v601
  %v757 = vmul.f32 %v756, 0.6931472
  %v758 = vlog2.pop %v602
  %v759 = vmul.f32 %v758, 0.6931472
  %v760 = vlog2.pop %v603
  %v761 = vmul.f32 %v760, 0.6931472
  %v762 = vlog2.pop %v604
  %v763 = vmul.f32 %v762, 0.6931472
  %v764 = vlog2.pop %v605
  %v765 = vmul.f32 %v764, 0.6931472
  %v766 = vsel %vm526, %v735, 0.0
  %v767 = vsel %vm527, %v737, 0.0
  %v768 = vsel %vm528, %v739, 0.0
  %v769 = vsel %vm529, %v741, 0.0
  %v770 = vsel %vm530, %v743, 0.0
  %v771 = vsel %vm531, %v745, 0.0
  %v772 = vsel %vm532, %v747, 0.0
  %v773 = vsel %vm533, %v749, 0.0
  %v774 = vsel %vm534, %v751, 0.0
  %v775 = vsel %vm535, %v753, 0.0
  %v776 = vsel %vm536, %v755, 0.0
  %v777 = vsel %vm537, %v757, 0.0
  %v778 = vsel %vm538, %v759, 0.0
  %v779 = vsel %vm539, %v761, 0.0
  %v780 = vsel %vm540, %v763, 0.0
  %v781 = vsel %vm541, %v765, 0.0
  %782 = vadd.xlane.f32.xlu0 %v766
  %v783 = vpop.xlane.xlu0 %782
  %784 = vadd.xlane.f32.xlu0 %v767
  %v785 = vpop.xlane.xlu0 %784
  %786 = vadd.xlane.f32.xlu0 %v768
  %v787 = vpop.xlane.xlu0 %786
  %788 = vadd.xlane.f32.xlu0 %v769
  %v789 = vpop.xlane.xlu0 %788
  %790 = vadd.xlane.f32.xlu0 %v770
  %v791 = vpop.xlane.xlu0 %790
  %792 = vadd.xlane.f32.xlu0 %v771
  %v793 = vpop.xlane.xlu0 %792
  %794 = vadd.xlane.f32.xlu0 %v772
  %v795 = vpop.xlane.xlu0 %794
  %796 = vadd.xlane.f32.xlu0 %v773
  %v797 = vpop.xlane.xlu0 %796
  %798 = vadd.xlane.f32.xlu0 %v774
  %v799 = vpop.xlane.xlu0 %798
  %800 = vadd.xlane.f32.xlu0 %v775
  %v801 = vpop.xlane.xlu0 %800
  %802 = vadd.xlane.f32.xlu0 %v776
  %v803 = vpop.xlane.xlu0 %802
  %804 = vadd.xlane.f32.xlu0 %v777
  %v805 = vpop.xlane.xlu0 %804
  %806 = vadd.xlane.f32.xlu0 %v778
  %v807 = vpop.xlane.xlu0 %806
  %808 = vadd.xlane.f32.xlu0 %v779
  %v809 = vpop.xlane.xlu0 %808
  %810 = vadd.xlane.f32.xlu0 %v780
  %v811 = vpop.xlane.xlu0 %810
  %812 = vadd.xlane.f32.xlu0 %v781
  %v813 = vpop.xlane.xlu0 %812
  %v814 = vadd.f32 %v783, 0.0
  %v815 = vadd.f32 %v785, 0.0
  %v816 = vadd.f32 %v787, 0.0
  %v817 = vadd.f32 %v789, 0.0
  %v818 = vadd.f32 %v791, 0.0
  %v819 = vadd.f32 %v793, 0.0
  %v820 = vadd.f32 %v795, 0.0
  %v821 = vadd.f32 %v797, 0.0
  %v822 = vadd.f32 %v799, 0.0
  %v823 = vadd.f32 %v801, 0.0
  %v824 = vadd.f32 %v803, 0.0
  %v825 = vadd.f32 %v805, 0.0
  %v826 = vadd.f32 %v807, 0.0
  %v827 = vadd.f32 %v809, 0.0
  %v828 = vadd.f32 %v811, 0.0
  %v829 = vadd.f32 %v813, 0.0
  %v830 = vlog2.pop %v654
  %v831 = vmul.f32 %v830, 0.6931472
  %v832 = vlog2.pop %v655
  %v833 = vmul.f32 %v832, 0.6931472
  %v834 = vlog2.pop %v656
  %v835 = vmul.f32 %v834, 0.6931472
  %v836 = vlog2.pop %v657
  %v837 = vmul.f32 %v836, 0.6931472
  %v838 = vlog2.pop %v658
  %v839 = vmul.f32 %v838, 0.6931472
  %v840 = vlog2.pop %v659
  %v841 = vmul.f32 %v840, 0.6931472
  %v842 = vlog2.pop %v660
  %v843 = vmul.f32 %v842, 0.6931472
  %v844 = vlog2.pop %v661
  %v845 = vmul.f32 %v844, 0.6931472
  %v846 = vlog2.pop %v662
  %v847 = vmul.f32 %v846, 0.6931472
  %v848 = vlog2.pop %v663
  %v849 = vmul.f32 %v848, 0.6931472
  %v850 = vlog2.pop %v664
  %v851 = vmul.f32 %v850, 0.6931472
  %v852 = vlog2.pop %v665
  %v853 = vmul.f32 %v852, 0.6931472
  %v854 = vlog2.pop %v666
  %v855 = vmul.f32 %v854, 0.6931472
  %v856 = vlog2.pop %v667
  %v857 = vmul.f32 %v856, 0.6931472
  %v858 = vlog2.pop %v668
  %v859 = vmul.f32 %v858, 0.6931472
  %v860 = vlog2.pop %v669
  %v861 = vmul.f32 %v860, 0.6931472
  %v862 = vrcp.pop %v718
  %v863 = vmul.f32 %v814, %v862
  %v864 = vrcp.pop %v719
  %v865 = vmul.f32 %v815, %v864
  %v866 = vrcp.pop %v720
  %v867 = vmul.f32 %v816, %v866
  %v868 = vrcp.pop %v721
  %v869 = vmul.f32 %v817, %v868
  %v870 = vrcp.pop %v722
  %v871 = vmul.f32 %v818, %v870
  %v872 = vrcp.pop %v723
  %v873 = vmul.f32 %v819, %v872
  %v874 = vrcp.pop %v724
  %v875 = vmul.f32 %v820, %v874
  %v876 = vrcp.pop %v725
  %v877 = vmul.f32 %v821, %v876
  %v878 = vrcp.pop %v726
  %v879 = vmul.f32 %v822, %v878
  %v880 = vrcp.pop %v727
  %v881 = vmul.f32 %v823, %v880
  %v882 = vrcp.pop %v728
  %v883 = vmul.f32 %v824, %v882
  %v884 = vrcp.pop %v729
  %v885 = vmul.f32 %v825, %v884
  %v886 = vrcp.pop %v730
  %v887 = vmul.f32 %v826, %v886
  %v888 = vrcp.pop %v731
  %v889 = vmul.f32 %v827, %v888
  %v890 = vrcp.pop %v732
  %v891 = vmul.f32 %v828, %v890
  %v892 = vrcp.pop %v733
  %v893 = vmul.f32 %v829, %v892
  %v894 = vsub.f32 %v831, %v863
  %v895 = vsub.f32 %v833, %v865
  %v896 = vsub.f32 %v835, %v867
  %v897 = vsub.f32 %v837, %v869
  %v898 = vsub.f32 %v839, %v871
  %v899 = vsub.f32 %v841, %v873
  %v900 = vsub.f32 %v843, %v875
  %v901 = vsub.f32 %v845, %v877
  %v902 = vsub.f32 %v847, %v879
  %v903 = vsub.f32 %v849, %v881
  %v904 = vsub.f32 %v851, %v883
  %v905 = vsub.f32 %v853, %v885
  %v906 = vsub.f32 %v855, %v887
  %v907 = vsub.f32 %v857, %v889
  %v908 = vsub.f32 %v859, %v891
  %v909 = vsub.f32 %v861, %v893
  %vm910 = vcmask 7168
  %911 = vst.msk [vmem:[%s3] sm:$0xff] %vm910, %v894
  %912 = vst.msk [vmem:[%s3 + $0x8] sm:$0xff] %vm910, %v895
  %913 = vst.msk [vmem:[%s3 + $0x10] sm:$0xff] %vm910, %v896
  %914 = vst.msk [vmem:[%s3 + $0x18] sm:$0xff] %vm910, %v897
  %915 = vst.msk [vmem:[%s3 + $0x20] sm:$0xff] %vm910, %v898
  %916 = vst.msk [vmem:[%s3 + $0x28] sm:$0xff] %vm910, %v899
  %917 = vst.msk [vmem:[%s3 + $0x30] sm:$0xff] %vm910, %v900
  %918 = vst.msk [vmem:[%s3 + $0x38] sm:$0xff] %vm910, %v901
  %919 = vst.msk [vmem:[%s3 + $0x40] sm:$0xff] %vm910, %v902
  %920 = vst.msk [vmem:[%s3 + $0x48] sm:$0xff] %vm910, %v903
  %921 = vst.msk [vmem:[%s3 + $0x50] sm:$0xff] %vm910, %v904
  %922 = vst.msk [vmem:[%s3 + $0x58] sm:$0xff] %vm910, %v905
  %923 = vst.msk [vmem:[%s3 + $0x60] sm:$0xff] %vm910, %v906
  %924 = vst.msk [vmem:[%s3 + $0x68] sm:$0xff] %vm910, %v907
  %925 = vst.msk [vmem:[%s3 + $0x70] sm:$0xff] %vm910, %v908
  %926 = vst.msk [vmem:[%s3 + $0x78] sm:$0xff] %vm910, %v909
  // Predicated region
  $region14: #{supervised_contrastive_loss.1} parent=0 // pred_check
    _
  $region15: #{supervised_contrastive_loss.1} parent=0 // pred_check_branch
    %928 = sbr.rel (0) target = $region17
  $region16: #{supervised_contrastive_loss.1} parent=0 // pred_region
    _
  $region17: #{supervised_contrastive_loss.1} parent=0 // pred_fallthru
    _
  // Predicated region
  $region18: #{supervised_contrastive_loss.1} parent=0 // pred_check
    _
  $region19: #{supervised_contrastive_loss.1} parent=0 // pred_check_branch
    %930 = sbr.rel (0) target = $region21
  $region20: #{supervised_contrastive_loss.1} parent=0 // pred_region
    _
  $region21: #{supervised_contrastive_loss.1} parent=0 // pred_fallthru
    _

</llo_original>
